<compile_context>
chip_gen: v6e
topology: v6e:2x2x1
jax: 0.10.0
libtpu: 0.0.40
codegen_flags: <defaults>
</compile_context>

<pallas_src>
import jax
import jax.numpy as jnp
import numpy as np
from jax import lax
from jax.experimental import pallas as pl
from jax.experimental.pallas import tpu as pltpu


def _bilinear_activation_kernel(q_ref, s_ref,
                                wq_ref, bq_ref, ws_ref, bs_ref,
                                wqa_ref, bqa_ref, wsa_ref, bsa_ref,
                                out_ref):
    """One grid step handles one tile of queries.

    q_ref:   (Din, Tq)    query embeddings (original layout, no transpose)
    s_ref:   (Din, Ns)    support embeddings
    wq/ws:   (Din, Dout)  lin_q / lin_s weights, (in, out) layout
    bq/bs:   (1, Dout)
    wqa/wsa: (Dout, P*H)  all pairs' squeeze weights stacked along columns
    bqa/bsa: (1, P*H)
    out_ref: (1, Tq)      lane-dense sigmoid(logits) tile
    """
    ns = float(s_ref.shape[1])

    # ---- Query side: (Din, Tq) contracted along Din (trans-A on the MXU). ----
    que = lax.dot_general(q_ref[...], wq_ref[...],
                          (((0,), (0,)), ((), ())),
                          preferred_element_type=jnp.float32) + bq_ref[...]      # (Tq, Dout)
    f_q = jnp.dot(que, wqa_ref[...],
                  preferred_element_type=jnp.float32) + bqa_ref[...]             # (Tq, P*H)

    # ---- Support side collapses to one row vector (sum over Ns commutes with
    #      every linear op; dropout is identity in eval mode). ----
    s_sum = jnp.sum(s_ref[...], axis=1, keepdims=True)                           # (Din, 1)
    sup_sum = lax.dot_general(s_sum, ws_ref[...],
                              (((0,), (0,)), ((), ())),
                              preferred_element_type=jnp.float32) \
        + ns * bs_ref[...]                                                       # (1, Dout)
    f_s_sum = jnp.dot(sup_sum, wsa_ref[...],
                      preferred_element_type=jnp.float32) + ns * bsa_ref[...]    # (1, P*H)

    # logits[q] = f_q[q, :] . f_s_sum  ->  lane-dense (1, Tq), no transpose.
    logits = lax.dot_general(f_s_sum, f_q, (((1,), (1,)), ((), ())),
                             preferred_element_type=jnp.float32)                 # (1, Tq)
    out_ref[...] = (1.0 / (1.0 + jnp.exp(-logits))).astype(out_ref.dtype)


def _pick_query_tile(nq, max_tile=1024):
    """Largest lane-aligned tile that evenly divides Nq (full extent if small)."""
    if nq <= max_tile or nq % 128 != 0:
        return nq
    t = max_tile - (max_tile % 128)
    while t >= 128:
        if nq % t == 0:
            return t
        t -= 128
    return nq


def bilinear_activation_slice_pallas(query_emb, support_emb, params):
    """query_emb: (Din, Nq); support_emb: (Din, Ns). Returns (Nq,) float32."""
    wq, bq = params["wq"], params["bq"]          # (Din, Dout), (Dout,)
    ws, bs = params["ws"], params["bs"]
    wque, bque = params["wque"], params["bque"]  # (P, Dout, H), (P, H)
    wsup, bsup = params["wsup"], params["bsup"]

    din, nq = query_emb.shape
    _, ns = support_emb.shape
    p, dout, hid = wque.shape
    ph = p * hid

    # Pair collapse: stack the P squeeze layers along the output axis so the
    # whole pair loop becomes a single K = P*H contraction.
    wque_all = jnp.transpose(wque, (1, 0, 2)).reshape(dout, ph)
    wsup_all = jnp.transpose(wsup, (1, 0, 2)).reshape(dout, ph)
    bque_all = bque.reshape(1, ph)
    bsup_all = bsup.reshape(1, ph)
    bq2 = bq.reshape(1, dout)
    bs2 = bs.reshape(1, dout)

    tq = _pick_query_tile(nq)
    grid = (nq // tq,)

    out = pl.pallas_call(
        _bilinear_activation_kernel,
        out_shape=jax.ShapeDtypeStruct((1, nq), jnp.float32),
        grid=grid,
        in_specs=[
            pl.BlockSpec((din, tq), lambda i: (0, i)),       # query tile
            pl.BlockSpec((din, ns), lambda i: (0, 0)),       # support
            pl.BlockSpec((din, dout), lambda i: (0, 0)),     # wq
            pl.BlockSpec((1, dout), lambda i: (0, 0)),       # bq
            pl.BlockSpec((din, dout), lambda i: (0, 0)),     # ws
            pl.BlockSpec((1, dout), lambda i: (0, 0)),       # bs
            pl.BlockSpec((dout, ph), lambda i: (0, 0)),      # wque (stacked)
            pl.BlockSpec((1, ph), lambda i: (0, 0)),         # bque (stacked)
            pl.BlockSpec((dout, ph), lambda i: (0, 0)),      # wsup (stacked)
            pl.BlockSpec((1, ph), lambda i: (0, 0)),         # bsup (stacked)
        ],
        out_specs=pl.BlockSpec((1, tq), lambda i: (0, i)),
        compiler_params=pltpu.CompilerParams(
            dimension_semantics=("parallel",)),              # Nq tiles are independent
    )(query_emb, support_emb, wq, bq2, ws, bs2,
      wque_all, bque_all, wsup_all, bsup_all)

    return out.reshape(nq)


def bilinear_activation_slice_ref(query_emb, support_emb, params):
    """Pure-JAX reference mirroring the PyTorch forward (eval mode)."""
    que = query_emb.T @ params["wq"] + params["bq"]
    sup = support_emb.T @ params["ws"] + params["bs"]
    p = params["wque"].shape[0]
    acc = jnp.zeros((que.shape[0], sup.shape[0]), jnp.float32)
    for i in range(p):
        f_fq = que @ params["wque"][i] + params["bque"][i]
        f_fs = sup @ params["wsup"][i] + params["bsup"][i]
        acc = acc + f_fq @ f_fs.T
    logits = acc.sum(axis=1)
    return jax.nn.sigmoid(logits)


if __name__ == "__main__":
    key = jax.random.PRNGKey(0)
    ks = jax.random.split(key, 10)

    din, dout, hid = 32, 64, 32     # input_dim, out_dim, hidden_dim
    num_pairs = 4                   # num_layers -> num_pairs
    nq, ns = 8, 16                  # number of query / support embeddings

    scale = 0.05                    # keeps logits out of sigmoid saturation
    query_emb = jax.random.normal(ks[0], (din, nq), dtype=jnp.float32)
    support_emb = jax.random.normal(ks[1], (din, ns), dtype=jnp.float32)

    params = {
        "wq":   scale * jax.random.normal(ks[2], (din, dout), jnp.float32),
        "bq":   scale * jax.random.normal(ks[3], (dout,), jnp.float32),
        "ws":   scale * jax.random.normal(ks[4], (din, dout), jnp.float32),
        "bs":   scale * jax.random.normal(ks[5], (dout,), jnp.float32),
        "wque": scale * jax.random.normal(ks[6], (num_pairs, dout, hid), jnp.float32),
        "bque": scale * jax.random.normal(ks[7], (num_pairs, hid), jnp.float32),
        "wsup": scale * jax.random.normal(ks[8], (num_pairs, dout, hid), jnp.float32),
        "bsup": scale * jax.random.normal(ks[9], (num_pairs, hid), jnp.float32),
    }

    out = bilinear_activation_slice_pallas(query_emb, support_emb, params)
    out = jax.block_until_ready(out)

    ref = bilinear_activation_slice_ref(query_emb, support_emb, params)
    np.testing.assert_allclose(np.asarray(out), np.asarray(ref),
                               rtol=1e-4, atol=1e-5)

    print("KERNEL_OK")
</pallas_src>

<mosaic_0001>
module attributes {stable_mosaic.version = 11 : i64} {
  func.func @_bilinear_activation_kernel(%arg0: i32, %arg1: memref<32x8xf32, #tpu.memory_space<vmem>>, %arg2: memref<32x16xf32, #tpu.memory_space<vmem>>, %arg3: memref<32x64xf32, #tpu.memory_space<vmem>>, %arg4: memref<1x64xf32, #tpu.memory_space<vmem>>, %arg5: memref<32x64xf32, #tpu.memory_space<vmem>>, %arg6: memref<1x64xf32, #tpu.memory_space<vmem>>, %arg7: memref<64x128xf32, #tpu.memory_space<vmem>>, %arg8: memref<1x128xf32, #tpu.memory_space<vmem>>, %arg9: memref<64x128xf32, #tpu.memory_space<vmem>>, %arg10: memref<1x128xf32, #tpu.memory_space<vmem>>, %arg11: memref<1x8xf32, #tpu.memory_space<vmem>>) attributes {dimension_semantics = [#tpu.dimension_semantics<parallel>], iteration_bounds = array<i64: 1>, scalar_prefetch = 0 : i64, scratch_operands = 0 : i64, tpu.core_type = #tpu.core_type<tc>, window_params = [{transform_indices = @transform_0, window_bounds = array<i64: 32, 8>}, {pipeline_mode = #tpu.pipeline_mode<synchronous>, transform_indices = @transform_1, window_bounds = array<i64: 32, 16>}, {pipeline_mode = #tpu.pipeline_mode<synchronous>, transform_indices = @transform_2, window_bounds = array<i64: 32, 64>}, {pipeline_mode = #tpu.pipeline_mode<synchronous>, transform_indices = @transform_3, window_bounds = array<i64: 1, 64>}, {pipeline_mode = #tpu.pipeline_mode<synchronous>, transform_indices = @transform_4, window_bounds = array<i64: 32, 64>}, {pipeline_mode = #tpu.pipeline_mode<synchronous>, transform_indices = @transform_5, window_bounds = array<i64: 1, 64>}, {pipeline_mode = #tpu.pipeline_mode<synchronous>, transform_indices = @transform_6, window_bounds = array<i64: 64, 128>}, {pipeline_mode = #tpu.pipeline_mode<synchronous>, transform_indices = @transform_7, window_bounds = array<i64: 1, 128>}, {pipeline_mode = #tpu.pipeline_mode<synchronous>, transform_indices = @transform_8, window_bounds = array<i64: 64, 128>}, {pipeline_mode = #tpu.pipeline_mode<synchronous>, transform_indices = @transform_9, window_bounds = array<i64: 1, 128>}, {transform_indices = @transform_10, window_bounds = array<i64: 1, 8>}]} {
    %c0 = arith.constant 0 : index
    %c0_0 = arith.constant 0 : index
    %0 = vector.load %arg1[%c0, %c0_0] : memref<32x8xf32, #tpu.memory_space<vmem>>, vector<32x8xf32>
    %c0_1 = arith.constant 0 : index
    %c0_2 = arith.constant 0 : index
    %1 = vector.load %arg3[%c0_1, %c0_2] : memref<32x64xf32, #tpu.memory_space<vmem>>, vector<32x64xf32>
    %cst = arith.constant dense<0.000000e+00> : vector<8x64xf32>
    %2 = tpu.matmul %0, %1, %cst {dimension_numbers = #tpu.dot_dimension_numbers<[0], [0], [1], [1], [0, 1, 1, 1], [], []>} : vector<32x8xf32>, vector<32x64xf32>, vector<8x64xf32> -> vector<8x64xf32>
    %c0_3 = arith.constant 0 : index
    %c0_4 = arith.constant 0 : index
    %3 = vector.load %arg4[%c0_3, %c0_4] : memref<1x64xf32, #tpu.memory_space<vmem>>, vector<1x64xf32>
    %4 = vector.broadcast %3 : vector<1x64xf32> to vector<8x64xf32>
    %5 = arith.addf %2, %4 : vector<8x64xf32>
    %c0_5 = arith.constant 0 : index
    %c0_6 = arith.constant 0 : index
    %6 = vector.load %arg7[%c0_5, %c0_6] : memref<64x128xf32, #tpu.memory_space<vmem>>, vector<64x128xf32>
    %cst_7 = arith.constant dense<0.000000e+00> : vector<8x128xf32>
    %7 = tpu.matmul %5, %6, %cst_7 {dimension_numbers = #tpu.dot_dimension_numbers<[1], [0], [0], [1], [0, 0, 1, 1], [], []>} : vector<8x64xf32>, vector<64x128xf32>, vector<8x128xf32> -> vector<8x128xf32>
    %c0_8 = arith.constant 0 : index
    %c0_9 = arith.constant 0 : index
    %8 = vector.load %arg8[%c0_8, %c0_9] : memref<1x128xf32, #tpu.memory_space<vmem>>, vector<1x128xf32>
    %9 = vector.broadcast %8 : vector<1x128xf32> to vector<8x128xf32>
    %10 = arith.addf %7, %9 : vector<8x128xf32>
    %c0_10 = arith.constant 0 : index
    %c0_11 = arith.constant 0 : index
    %11 = vector.load %arg2[%c0_10, %c0_11] : memref<32x16xf32, #tpu.memory_space<vmem>>, vector<32x16xf32>
    %cst_12 = arith.constant dense<0.000000e+00> : vector<32xf32>
    %12 = vector.multi_reduction <add>, %11, %cst_12 [1] : vector<32x16xf32> to vector<32xf32>
    %13 = vector.shape_cast %12 : vector<32xf32> to vector<32x1xf32>
    %c0_13 = arith.constant 0 : index
    %c0_14 = arith.constant 0 : index
    %14 = vector.load %arg5[%c0_13, %c0_14] : memref<32x64xf32, #tpu.memory_space<vmem>>, vector<32x64xf32>
    %cst_15 = arith.constant dense<0.000000e+00> : vector<1x64xf32>
    %15 = tpu.matmul %13, %14, %cst_15 {dimension_numbers = #tpu.dot_dimension_numbers<[0], [0], [1], [1], [0, 1, 1, 1], [], []>} : vector<32x1xf32>, vector<32x64xf32>, vector<1x64xf32> -> vector<1x64xf32>
    %c0_16 = arith.constant 0 : index
    %c0_17 = arith.constant 0 : index
    %16 = vector.load %arg6[%c0_16, %c0_17] : memref<1x64xf32, #tpu.memory_space<vmem>>, vector<1x64xf32>
    %cst_18 = arith.constant 1.600000e+01 : f32
    %17 = vector.broadcast %cst_18 : f32 to vector<1x64xf32>
    %18 = arith.mulf %17, %16 : vector<1x64xf32>
    %19 = arith.addf %15, %18 : vector<1x64xf32>
    %c0_19 = arith.constant 0 : index
    %c0_20 = arith.constant 0 : index
    %20 = vector.load %arg9[%c0_19, %c0_20] : memref<64x128xf32, #tpu.memory_space<vmem>>, vector<64x128xf32>
    %cst_21 = arith.constant dense<0.000000e+00> : vector<1x128xf32>
    %21 = tpu.matmul %19, %20, %cst_21 {dimension_numbers = #tpu.dot_dimension_numbers<[1], [0], [0], [1], [0, 0, 1, 1], [], []>} : vector<1x64xf32>, vector<64x128xf32>, vector<1x128xf32> -> vector<1x128xf32>
    %c0_22 = arith.constant 0 : index
    %c0_23 = arith.constant 0 : index
    %22 = vector.load %arg10[%c0_22, %c0_23] : memref<1x128xf32, #tpu.memory_space<vmem>>, vector<1x128xf32>
    %cst_24 = arith.constant 1.600000e+01 : f32
    %23 = vector.broadcast %cst_24 : f32 to vector<1x128xf32>
    %24 = arith.mulf %23, %22 : vector<1x128xf32>
    %25 = arith.addf %21, %24 : vector<1x128xf32>
    %cst_25 = arith.constant dense<0.000000e+00> : vector<1x8xf32>
    %26 = tpu.matmul %25, %10, %cst_25 {dimension_numbers = #tpu.dot_dimension_numbers<[1], [1], [0], [0], [0, 0, 1, 0], [], []>} : vector<1x128xf32>, vector<8x128xf32>, vector<1x8xf32> -> vector<1x8xf32>
    %cst_26 = arith.constant 0.000000e+00 : f32
    %27 = vector.broadcast %cst_26 : f32 to vector<1x8xf32>
    %28 = arith.subf %27, %26 : vector<1x8xf32>
    %29 = math.exp %28 : vector<1x8xf32>
    %cst_27 = arith.constant 1.000000e+00 : f32
    %30 = vector.broadcast %cst_27 : f32 to vector<1x8xf32>
    %31 = arith.addf %30, %29 : vector<1x8xf32>
    %cst_28 = arith.constant 1.000000e+00 : f32
    %32 = vector.broadcast %cst_28 : f32 to vector<1x8xf32>
    %33 = arith.divf %32, %31 : vector<1x8xf32>
    %c0_29 = arith.constant 0 : index
    %c0_30 = arith.constant 0 : index
    %34 = vector.load %arg11[%c0_29, %c0_30] : memref<1x8xf32, #tpu.memory_space<vmem>>, vector<1x8xf32>
    tpu.vector_store %arg11[%c0_29, %c0_30], %33 {strides = array<i32>} : memref<1x8xf32, #tpu.memory_space<vmem>>, vector<1x8xf32>,
    return
  }
  func.func @transform_0(%arg0: i32) -> (i32, i32) {
    %c0_i32 = arith.constant 0 : i32
    %c0_i32_0 = arith.constant 0 : i32
    return %c0_i32, %arg0 : i32, i32
  }
  func.func @transform_1(%arg0: i32) -> (i32, i32) {
    %c0_i32 = arith.constant 0 : i32
    %c0_i32_0 = arith.constant 0 : i32
    %c0_i32_1 = arith.constant 0 : i32
    return %c0_i32, %c0_i32_0 : i32, i32
  }
  func.func @transform_2(%arg0: i32) -> (i32, i32) {
    %c0_i32 = arith.constant 0 : i32
    %c0_i32_0 = arith.constant 0 : i32
    %c0_i32_1 = arith.constant 0 : i32
    return %c0_i32, %c0_i32_0 : i32, i32
  }
  func.func @transform_3(%arg0: i32) -> (i32, i32) {
    %c0_i32 = arith.constant 0 : i32
    %c0_i32_0 = arith.constant 0 : i32
    %c0_i32_1 = arith.constant 0 : i32
    return %c0_i32, %c0_i32_0 : i32, i32
  }
  func.func @transform_4(%arg0: i32) -> (i32, i32) {
    %c0_i32 = arith.constant 0 : i32
    %c0_i32_0 = arith.constant 0 : i32
    %c0_i32_1 = arith.constant 0 : i32
    return %c0_i32, %c0_i32_0 : i32, i32
  }
  func.func @transform_5(%arg0: i32) -> (i32, i32) {
    %c0_i32 = arith.constant 0 : i32
    %c0_i32_0 = arith.constant 0 : i32
    %c0_i32_1 = arith.constant 0 : i32
    return %c0_i32, %c0_i32_0 : i32, i32
  }
  func.func @transform_6(%arg0: i32) -> (i32, i32) {
    %c0_i32 = arith.constant 0 : i32
    %c0_i32_0 = arith.constant 0 : i32
    %c0_i32_1 = arith.constant 0 : i32
    return %c0_i32, %c0_i32_0 : i32, i32
  }
  func.func @transform_7(%arg0: i32) -> (i32, i32) {
    %c0_i32 = arith.constant 0 : i32
    %c0_i32_0 = arith.constant 0 : i32
    %c0_i32_1 = arith.constant 0 : i32
    return %c0_i32, %c0_i32_0 : i32, i32
  }
  func.func @transform_8(%arg0: i32) -> (i32, i32) {
    %c0_i32 = arith.constant 0 : i32
    %c0_i32_0 = arith.constant 0 : i32
    %c0_i32_1 = arith.constant 0 : i32
    return %c0_i32, %c0_i32_0 : i32, i32
  }
  func.func @transform_9(%arg0: i32) -> (i32, i32) {
    %c0_i32 = arith.constant 0 : i32
    %c0_i32_0 = arith.constant 0 : i32
    %c0_i32_1 = arith.constant 0 : i32
    return %c0_i32, %c0_i32_0 : i32, i32
  }
  func.func @transform_10(%arg0: i32) -> (i32, i32) {
    %c0_i32 = arith.constant 0 : i32
    %c0_i32_0 = arith.constant 0 : i32
    return %c0_i32, %arg0 : i32, i32
  }
}

</mosaic_0001>

<llo_original>
// kernel: tpu_custom_call.1
$region0: #{tpu_custom_call.1}
  #allocation0 [shape = 'u32[]', space=smem, size = 0x4, offset = 0x4, fixed_abs, tag = 'smem constant byte address 0x4 - core index']
  #allocation1 [shape = 'u32[144,128]{1,0:T(1,128)}', space=vmem, size = 0x12000, scoped, tag = 'internal scratch']
  %s0 = inlined_call_operand.vmem [shape: f32[32,8], index: 0, kind: input, shape index: {}]
  %s1 = inlined_call_operand.vmem [shape: f32[32,16], index: 1, kind: input, shape index: {}]
  %s2 = inlined_call_operand.vmem [shape: f32[32,64], index: 2, kind: input, shape index: {}]
  %s3 = inlined_call_operand.vmem [shape: f32[1,64], index: 3, kind: input, shape index: {}]
  %s4 = inlined_call_operand.hbm [shape: f32[32,64], index: 4, kind: input, shape index: {}]
  %s5 = inlined_call_operand.vmem [shape: f32[1,64], index: 5, kind: input, shape index: {}]
  %s6 = inlined_call_operand.vmem [shape: f32[64,128], index: 6, kind: input, shape index: {}]
  %s7 = inlined_call_operand.vmem [shape: f32[1,128], index: 7, kind: input, shape index: {}]
  %s8 = inlined_call_operand.hbm [shape: f32[64,128], index: 8, kind: input, shape index: {}]
  %s9 = inlined_call_operand.vmem [shape: f32[1,128], index: 9, kind: input, shape index: {}]
  %s10 = inlined_call_operand.hbm [shape: f32[1,8], index: 10, kind: output, shape index: {}]
  %s11 = sld [smem:[#allocation0]]
  $region58: #{tpu_custom_call.1} parent=0
    _
  %s13 = ssub.s32 1, %s11
  %s14 = scalar_select 0, %s13, %s11
  $region1: #{tpu_custom_call.1} parent=0
    #allocation2 [shape = 'u8[16384]{0}', space=vmem, size = 0x4000, scoped, tag = 'input window, operand 4, single buffered']
    #allocation3 [shape = 's32[1]{0}', space=sflag, size = 0x4, scoped, tag = 'scoped memory for tpu_custom_call.1']
    #allocation4 [shape = 's32[1]{0}', space=sflag, size = 0x4, scoped, tag = 'scoped memory for tpu_custom_call.1']
    #allocation5 [shape = 'u8[32768]{0}', space=vmem, size = 0x8000, scoped, tag = 'input window, operand 8, single buffered']
    #allocation6 [shape = 's32[1]{0}', space=sflag, size = 0x4, scoped, tag = 'scoped memory for tpu_custom_call.1']
    #allocation7 [shape = 'u8[512]{0}', space=vmem, size = 0x400, scoped, tag = 'output window, operand 0, single buffered']
    %15 = vsyncpa [#allocation3], 0
    %16 = vsyncpa [#allocation6], 0
    %17 = vsyncpa [#allocation4], 0
    // Predicated region
    $region2: #{tpu_custom_call.1} parent=1 // pred_check
      _
    $region3: #{tpu_custom_call.1} parent=1 // pred_check_branch
      %19 = sbr.rel (0) target = $region5
    $region4: #{tpu_custom_call.1} parent=1 // pred_region
      _
    $region5: #{tpu_custom_call.1} parent=1 // pred_fallthru
      _
    // Predicated region
    $region6: #{tpu_custom_call.1} parent=1 // pred_check
      _
    $region7: #{tpu_custom_call.1} parent=1 // pred_check_branch
      %21 = sbr.rel (0) target = $region9
    $region8: #{tpu_custom_call.1} parent=1 // pred_region
      _
    $region9: #{tpu_custom_call.1} parent=1 // pred_fallthru
      _
    // Predicated region
    $region10: #{tpu_custom_call.1} parent=1 // pred_check
      _
    $region11: #{tpu_custom_call.1} parent=1 // pred_check_branch
      %23 = sbr.rel (0) target = $region13
    $region12: #{tpu_custom_call.1} parent=1 // pred_region
      _
    $region13: #{tpu_custom_call.1} parent=1 // pred_fallthru
      _
    // Predicated region
    $region14: #{tpu_custom_call.1} parent=1 // pred_check
      _
    $region15: #{tpu_custom_call.1} parent=1 // pred_check_branch
      %25 = sbr.rel (0) target = $region17
    $region16: #{tpu_custom_call.1} parent=1 // pred_region
      _
    $region17: #{tpu_custom_call.1} parent=1 // pred_fallthru
      _
    // Predicated region
    $region18: #{tpu_custom_call.1} parent=1 // pred_check
      _
    $region19: #{tpu_custom_call.1} parent=1 // pred_check_branch
      %27 = sbr.rel (0) target = $region21
    $region20: #{tpu_custom_call.1} parent=1 // pred_region
      %s29 = ssub.s32 512, 512
      %30 = vsyncadd [#allocation3], %s29
      %s31 = sshll.u32 [#allocation2], 4
      %s32 = int_to_ptr.vmem [resolvable:$true] %s31
      %37 = dma.hbm_to_vmem [thread:$0]  %s4, 512, %s32, [#allocation3], 128, 128, 8
    $region21: #{tpu_custom_call.1} parent=1 // pred_fallthru
      _
    // Predicated region
    $region22: #{tpu_custom_call.1} parent=1 // pred_check
      _
    $region23: #{tpu_custom_call.1} parent=1 // pred_check_branch
      %39 = sbr.rel (0) target = $region25
    $region24: #{tpu_custom_call.1} parent=1 // pred_region
      _
    $region25: #{tpu_custom_call.1} parent=1 // pred_fallthru
      _
    // Predicated region
    $region26: #{tpu_custom_call.1} parent=1 // pred_check
      _
    $region27: #{tpu_custom_call.1} parent=1 // pred_check_branch
      %41 = sbr.rel (0) target = $region29
    $region28: #{tpu_custom_call.1} parent=1 // pred_region
      _
    $region29: #{tpu_custom_call.1} parent=1 // pred_fallthru
      _
    // Predicated region
    $region30: #{tpu_custom_call.1} parent=1 // pred_check
      _
    $region31: #{tpu_custom_call.1} parent=1 // pred_check_branch
      %43 = sbr.rel (0) target = $region33
    $region32: #{tpu_custom_call.1} parent=1 // pred_region
      _
    $region33: #{tpu_custom_call.1} parent=1 // pred_fallthru
      _
    // Predicated region
    $region34: #{tpu_custom_call.1} parent=1 // pred_check
      _
    $region35: #{tpu_custom_call.1} parent=1 // pred_check_branch
      %45 = sbr.rel (0) target = $region37
    $region36: #{tpu_custom_call.1} parent=1 // pred_region
      %s47 = ssub.s32 1024, 1024
      %48 = vsyncadd [#allocation6], %s47
      %s49 = sshll.u32 [#allocation5], 4
      %s50 = int_to_ptr.vmem [resolvable:$true] %s49
      %55 = dma.hbm_to_vmem [thread:$0]  %s8, 1024, %s50, [#allocation6], 128, 128, 8
    $region37: #{tpu_custom_call.1} parent=1 // pred_fallthru
      _
    // Predicated region
    $region38: #{tpu_custom_call.1} parent=1 // pred_check
      _
    $region39: #{tpu_custom_call.1} parent=1 // pred_check_branch
      %57 = sbr.rel (0) target = $region41
    $region40: #{tpu_custom_call.1} parent=1 // pred_region
      _
    $region41: #{tpu_custom_call.1} parent=1 // pred_fallthru
      _
    // Predicated region
    $region42: #{tpu_custom_call.1} parent=1 // pred_check
      _
    $region43: #{tpu_custom_call.1} parent=1 // pred_check_branch
      %59 = sbr.rel (0) target = $region45
    $region44: #{tpu_custom_call.1} parent=1 // pred_region
      %60 = dma.done [#allocation3], 512
    $region45: #{tpu_custom_call.1} parent=1 // pred_fallthru
      _
    // Predicated region
    $region46: #{tpu_custom_call.1} parent=1 // pred_check
      _
    $region47: #{tpu_custom_call.1} parent=1 // pred_check_branch
      %62 = sbr.rel (0) target = $region49
    $region48: #{tpu_custom_call.1} parent=1 // pred_region
      %63 = dma.done [#allocation6], 1024
    $region49: #{tpu_custom_call.1} parent=1 // pred_fallthru
      _
    %v64 = vld [vmem:[%s0] sm:$0xff]
    %v65 = vld [vmem:[%s0 + $0x8] sm:$0xff]
    %v66 = vld [vmem:[%s0 + $0x10] sm:$0xff]
    %v67 = vld [vmem:[%s0 + $0x18] sm:$0xff]
    %v68 = vld [vmem:[%s2] sm:$0xff]
    %v69 = vld [vmem:[%s2 + $0x8] sm:$0xff]
    %v70 = vld [vmem:[%s2 + $0x10] sm:$0xff]
    %v71 = vld [vmem:[%s2 + $0x18] sm:$0xff]
    %v72 = vld [vmem:[%s3] sm:$0x1]
    %v74 = vlaneseq
    %v75 = vshrl.u32 %v74, 7
    %v76 = vsub.s32 0, %v75
    %v77 = vrot.slane %v72, %v76
    %79 = vxpose.xlu0.b32.start [1/16] %v64, 128
    %80 = vxpose.xlu0.b32.cont [2/16] %v65, 128
    %81 = vxpose.xlu0.b32.cont [3/16] %v66, 128
    %82 = vxpose.xlu0.b32.cont [4/16] %v67, 128
    %83 = vxpose.xlu0.b32.cont [5/16] 0.0, 128
    %84 = vxpose.xlu0.b32.cont [6/16] 0.0, 128
    %85 = vxpose.xlu0.b32.cont [7/16] 0.0, 128
    %86 = vxpose.xlu0.b32.cont [8/16] 0.0, 128
    %87 = vxpose.xlu0.b32.cont [9/16] 0.0, 128
    %88 = vxpose.xlu0.b32.cont [10/16] 0.0, 128
    %89 = vxpose.xlu0.b32.cont [11/16] 0.0, 128
    %90 = vxpose.xlu0.b32.cont [12/16] 0.0, 128
    %91 = vxpose.xlu0.b32.cont [13/16] 0.0, 128
    %92 = vxpose.xlu0.b32.cont [14/16] 0.0, 128
    %93 = vxpose.xlu0.b32.cont [15/16] 0.0, 128
    %94 = vxpose.xlu0.b32.end [16/16] 0.0, 128
    %v95 = vpop.trf.xlu0
    %v96 = vpop.trf.xlu0
    %v97 = vpop.trf.xlu0
    %v98 = vpop.trf.xlu0
    %v99 = vpop.trf.xlu0
    %v100 = vpop.trf.xlu0
    %v101 = vpop.trf.xlu0
    %v102 = vpop.trf.xlu0
    %v103 = vpop.trf.xlu0
    %v104 = vpop.trf.xlu0
    %v105 = vpop.trf.xlu0
    %v106 = vpop.trf.xlu0
    %v107 = vpop.trf.xlu0
    %v108 = vpop.trf.xlu0
    %v109 = vpop.trf.xlu0
    %v110 = vpop.trf.xlu0
    %vm111 = vcmask 261120
    %v113 = vsel %vm111, %v95, 0
    %115 = vmatprep.subr.mxu0 0.0
    %116 = vmatpush1.msra.mxu0 0.0
    %117 = vmatprep.subr.mxu0 0.0
    %118 = vmatpush1.msra.mxu0 0.0
    %119 = vmatprep.subr.mxu0 0.0
    %120 = vmatpush1.msra.mxu0 0.0
    %121 = vmatprep.subr.mxu0 0.0
    %122 = vmatpush1.msra.mxu0 0.0
    %123 = vmatprep.subr.mxu0 0.0
    %124 = vmatpush1.msra.mxu0 0.0
    %125 = vmatprep.subr.mxu0 0.0
    %126 = vmatpush1.msra.mxu0 0.0
    %127 = vmatprep.subr.mxu0 0.0
    %128 = vmatpush1.msra.mxu0 0.0
    %129 = vmatprep.subr.mxu0 0.0
    %130 = vmatpush1.msra.mxu0 0.0
    %131 = vmatprep.subr.mxu0 0.0
    %132 = vmatpush1.msra.mxu0 0.0
    %133 = vmatprep.subr.mxu0 0.0
    %134 = vmatpush1.msra.mxu0 0.0
    %135 = vmatprep.subr.mxu0 0.0
    %136 = vmatpush1.msra.mxu0 0.0
    %137 = vmatprep.subr.mxu0 0.0
    %138 = vmatpush1.msra.mxu0 0.0
    %139 = vmatprep.subr.mxu0 0.0
    %140 = vmatpush1.msra.mxu0 %v71
    %141 = vmatprep.subr.mxu0 0.0
    %142 = vmatpush1.msra.mxu0 %v70
    %143 = vmatprep.subr.mxu0 0.0
    %144 = vmatpush1.msra.mxu0 %v69
    %145 = vmatprep.subr.mxu0 0.0
    %146 = vmatpush1.msra.mxu0 %v68
    %147 = vmatprep.subr.mxu0 0.0
    %148 = vmatpush2.msra.mxu0 0.0
    %149 = vmatprep.subr.mxu0 0.0
    %150 = vmatpush2.msra.mxu0 0.0
    %151 = vmatprep.subr.mxu0 0.0
    %152 = vmatpush2.msra.mxu0 0.0
    %153 = vmatprep.subr.mxu0 0.0
    %154 = vmatpush2.msra.mxu0 0.0
    %155 = vmatprep.subr.mxu0 0.0
    %156 = vmatpush2.msra.mxu0 0.0
    %157 = vmatprep.subr.mxu0 0.0
    %158 = vmatpush2.msra.mxu0 0.0
    %159 = vmatprep.subr.mxu0 0.0
    %160 = vmatpush2.msra.mxu0 0.0
    %161 = vmatprep.subr.mxu0 0.0
    %162 = vmatpush2.msra.mxu0 0.0
    %163 = vmatprep.subr.mxu0 0.0
    %164 = vmatpush2.msra.mxu0 0.0
    %165 = vmatprep.subr.mxu0 0.0
    %166 = vmatpush2.msra.mxu0 0.0
    %167 = vmatprep.subr.mxu0 0.0
    %168 = vmatpush2.msra.mxu0 0.0
    %169 = vmatprep.subr.mxu0 0.0
    %170 = vmatpush2.msra.mxu0 0.0
    %171 = vmatprep.subr.mxu0 0.0
    %172 = vmatpush2.msra.mxu0 0.0
    %173 = vmatprep.subr.mxu0 0.0
    %174 = vmatpush2.msra.mxu0 0.0
    %175 = vmatprep.subr.mxu0 0.0
    %176 = vmatpush2.msra.mxu0 0.0
    %177 = vmatprep.subr.mxu0 0.0
    %178 = vmatpush2.msra.mxu0 0.0
    %179 = vmatprep.mubr.f32.mxu0 0.0
    %180 = vmatmul.mubr.f32.gmra.mxu0 %v113
    %v181 = vpop.f32.mrf.mxu0
    %v182 = vadd.f32 %v77, %v181
    %v183 = vpop.f32.mrf.mxu0
    %184 = vdwg.mxu0
    %v185 = vld [vmem:[%s6] sm:$0xff]
    %v186 = vld [vmem:[%s6 + $0x8] sm:$0xff]
    %v187 = vld [vmem:[%s6 + $0x10] sm:$0xff]
    %v188 = vld [vmem:[%s6 + $0x18] sm:$0xff]
    %v189 = vld [vmem:[%s6 + $0x20] sm:$0xff]
    %v190 = vld [vmem:[%s6 + $0x28] sm:$0xff]
    %v191 = vld [vmem:[%s6 + $0x30] sm:$0xff]
    %v192 = vld [vmem:[%s6 + $0x38] sm:$0xff]
    %v193 = vld [vmem:[%s7] sm:$0x1]
    %v195 = vlaneseq
    %v196 = vshrl.u32 %v195, 7
    %v197 = vsub.s32 0, %v196
    %v198 = vrot.slane %v193, %v197
    %vm200 = vcmask 523264
    %v202 = vsel %vm200, %v182, 0
    %204 = vmatprep.subr.mxu0 0.0
    %205 = vmatpush1.msra.mxu0 0.0
    %206 = vmatprep.subr.mxu0 0.0
    %207 = vmatpush1.msra.mxu0 0.0
    %208 = vmatprep.subr.mxu0 0.0
    %209 = vmatpush1.msra.mxu0 0.0
    %210 = vmatprep.subr.mxu0 0.0
    %211 = vmatpush1.msra.mxu0 0.0
    %212 = vmatprep.subr.mxu0 0.0
    %213 = vmatpush1.msra.mxu0 0.0
    %214 = vmatprep.subr.mxu0 0.0
    %215 = vmatpush1.msra.mxu0 0.0
    %216 = vmatprep.subr.mxu0 0.0
    %217 = vmatpush1.msra.mxu0 0.0
    %218 = vmatprep.subr.mxu0 0.0
    %219 = vmatpush1.msra.mxu0 0.0
    %220 = vmatprep.subr.mxu0 0.0
    %221 = vmatpush1.msra.mxu0 %v192
    %222 = vmatprep.subr.mxu0 0.0
    %223 = vmatpush1.msra.mxu0 %v191
    %224 = vmatprep.subr.mxu0 0.0
    %225 = vmatpush1.msra.mxu0 %v190
    %226 = vmatprep.subr.mxu0 0.0
    %227 = vmatpush1.msra.mxu0 %v189
    %228 = vmatprep.subr.mxu0 0.0
    %229 = vmatpush1.msra.mxu0 %v188
    %230 = vmatprep.subr.mxu0 0.0
    %231 = vmatpush1.msra.mxu0 %v187
    %232 = vmatprep.subr.mxu0 0.0
    %233 = vmatpush1.msra.mxu0 %v186
    %234 = vmatprep.subr.mxu0 0.0
    %235 = vmatpush1.msra.mxu0 %v185
    %236 = vmatprep.subr.mxu0 0.0
    %237 = vmatpush2.msra.mxu0 0.0
    %238 = vmatprep.subr.mxu0 0.0
    %239 = vmatpush2.msra.mxu0 0.0
    %240 = vmatprep.subr.mxu0 0.0
    %241 = vmatpush2.msra.mxu0 0.0
    %242 = vmatprep.subr.mxu0 0.0
    %243 = vmatpush2.msra.mxu0 0.0
    %244 = vmatprep.subr.mxu0 0.0
    %245 = vmatpush2.msra.mxu0 0.0
    %246 = vmatprep.subr.mxu0 0.0
    %247 = vmatpush2.msra.mxu0 0.0
    %248 = vmatprep.subr.mxu0 0.0
    %249 = vmatpush2.msra.mxu0 0.0
    %250 = vmatprep.subr.mxu0 0.0
    %251 = vmatpush2.msra.mxu0 0.0
    %252 = vmatprep.subr.mxu0 0.0
    %253 = vmatpush2.msra.mxu0 0.0
    %254 = vmatprep.subr.mxu0 0.0
    %255 = vmatpush2.msra.mxu0 0.0
    %256 = vmatprep.subr.mxu0 0.0
    %257 = vmatpush2.msra.mxu0 0.0
    %258 = vmatprep.subr.mxu0 0.0
    %259 = vmatpush2.msra.mxu0 0.0
    %260 = vmatprep.subr.mxu0 0.0
    %261 = vmatpush2.msra.mxu0 0.0
    %262 = vmatprep.subr.mxu0 0.0
    %263 = vmatpush2.msra.mxu0 0.0
    %264 = vmatprep.subr.mxu0 0.0
    %265 = vmatpush2.msra.mxu0 0.0
    %266 = vmatprep.subr.mxu0 0.0
    %267 = vmatpush2.msra.mxu0 0.0
    %268 = vmatprep.mubr.f32.mxu0 0.0
    %269 = vmatmul.mubr.f32.gmra.mxu0 %v202
    %v270 = vpop.f32.mrf.mxu0
    %v271 = vadd.f32 %v198, %v270
    %v272 = vpop.f32.mrf.mxu0
    %273 = vdwg.mxu0
    %v274 = vld [vmem:[%s1] sm:$0xff]
    %v275 = vld [vmem:[%s1 + $0x8] sm:$0xff]
    %v276 = vld [vmem:[%s1 + $0x10] sm:$0xff]
    %v277 = vld [vmem:[%s1 + $0x18] sm:$0xff]
    %vm278 = vcmask 130048
    %v279 = vsel %vm278, %v274, 0.0
    %280 = vadd.xlane.f32.xlu0 %v279
    %v281 = vpop.xlane.xlu0 %280
    %v282 = vsel %vm278, %v275, 0.0
    %283 = vadd.xlane.f32.xlu0 %v282
    %v284 = vpop.xlane.xlu0 %283
    %v285 = vsel %vm278, %v276, 0.0
    %286 = vadd.xlane.f32.xlu0 %v285
    %v287 = vpop.xlane.xlu0 %286
    %v288 = vsel %vm278, %v277, 0.0
    %289 = vadd.xlane.f32.xlu0 %v288
    %v290 = vpop.xlane.xlu0 %289
    %v291 = vld [vmem:[#allocation2] sm:$0xff]
    %v292 = vld [vmem:[#allocation2 + $0x8] sm:$0xff]
    %v293 = vld [vmem:[#allocation2 + $0x10] sm:$0xff]
    %v294 = vld [vmem:[#allocation2 + $0x18] sm:$0xff]
    %v295 = vld [vmem:[%s5] sm:$0x1]
    %v296 = vmul.f32 %v295, 16.0
    %297 = vxpose.xlu0.b32.start [1/16] %v281, 128
    %298 = vxpose.xlu0.b32.cont [2/16] %v284, 128
    %299 = vxpose.xlu0.b32.cont [3/16] %v287, 128
    %300 = vxpose.xlu0.b32.cont [4/16] %v290, 128
    %301 = vxpose.xlu0.b32.cont [5/16] 0.0, 128
    %302 = vxpose.xlu0.b32.cont [6/16] 0.0, 128
    %303 = vxpose.xlu0.b32.cont [7/16] 0.0, 128
    %304 = vxpose.xlu0.b32.cont [8/16] 0.0, 128
    %305 = vxpose.xlu0.b32.cont [9/16] 0.0, 128
    %306 = vxpose.xlu0.b32.cont [10/16] 0.0, 128
    %307 = vxpose.xlu0.b32.cont [11/16] 0.0, 128
    %308 = vxpose.xlu0.b32.cont [12/16] 0.0, 128
    %309 = vxpose.xlu0.b32.cont [13/16] 0.0, 128
    %310 = vxpose.xlu0.b32.cont [14/16] 0.0, 128
    %311 = vxpose.xlu0.b32.cont [15/16] 0.0, 128
    %312 = vxpose.xlu0.b32.end [16/16] 0.0, 128
    %v313 = vpop.trf.xlu0
    %v314 = vpop.trf.xlu0
    %v315 = vpop.trf.xlu0
    %v316 = vpop.trf.xlu0
    %v317 = vpop.trf.xlu0
    %v318 = vpop.trf.xlu0
    %v319 = vpop.trf.xlu0
    %v320 = vpop.trf.xlu0
    %v321 = vpop.trf.xlu0
    %v322 = vpop.trf.xlu0
    %v323 = vpop.trf.xlu0
    %v324 = vpop.trf.xlu0
    %v325 = vpop.trf.xlu0
    %v326 = vpop.trf.xlu0
    %v327 = vpop.trf.xlu0
    %v328 = vpop.trf.xlu0
    %v330 = vsel %vm111, %v313, 0
    %332 = vmatprep.subr.mxu0 0.0
    %333 = vmatpush1.msra.mxu0 0.0
    %334 = vmatprep.subr.mxu0 0.0
    %335 = vmatpush1.msra.mxu0 0.0
    %336 = vmatprep.subr.mxu0 0.0
    %337 = vmatpush1.msra.mxu0 0.0
    %338 = vmatprep.subr.mxu0 0.0
    %339 = vmatpush1.msra.mxu0 0.0
    %340 = vmatprep.subr.mxu0 0.0
    %341 = vmatpush1.msra.mxu0 0.0
    %342 = vmatprep.subr.mxu0 0.0
    %343 = vmatpush1.msra.mxu0 0.0
    %344 = vmatprep.subr.mxu0 0.0
    %345 = vmatpush1.msra.mxu0 0.0
    %346 = vmatprep.subr.mxu0 0.0
    %347 = vmatpush1.msra.mxu0 0.0
    %348 = vmatprep.subr.mxu0 0.0
    %349 = vmatpush1.msra.mxu0 0.0
    %350 = vmatprep.subr.mxu0 0.0
    %351 = vmatpush1.msra.mxu0 0.0
    %352 = vmatprep.subr.mxu0 0.0
    %353 = vmatpush1.msra.mxu0 0.0
    %354 = vmatprep.subr.mxu0 0.0
    %355 = vmatpush1.msra.mxu0 0.0
    %356 = vmatprep.subr.mxu0 0.0
    %357 = vmatpush1.msra.mxu0 %v294
    %358 = vmatprep.subr.mxu0 0.0
    %359 = vmatpush1.msra.mxu0 %v293
    %360 = vmatprep.subr.mxu0 0.0
    %361 = vmatpush1.msra.mxu0 %v292
    %362 = vmatprep.subr.mxu0 0.0
    %363 = vmatpush1.msra.mxu0 %v291
    %364 = vmatprep.subr.mxu0 0.0
    %365 = vmatpush2.msra.mxu0 0.0
    %366 = vmatprep.subr.mxu0 0.0
    %367 = vmatpush2.msra.mxu0 0.0
    %368 = vmatprep.subr.mxu0 0.0
    %369 = vmatpush2.msra.mxu0 0.0
    %370 = vmatprep.subr.mxu0 0.0
    %371 = vmatpush2.msra.mxu0 0.0
    %372 = vmatprep.subr.mxu0 0.0
    %373 = vmatpush2.msra.mxu0 0.0
    %374 = vmatprep.subr.mxu0 0.0
    %375 = vmatpush2.msra.mxu0 0.0
    %376 = vmatprep.subr.mxu0 0.0
    %377 = vmatpush2.msra.mxu0 0.0
    %378 = vmatprep.subr.mxu0 0.0
    %379 = vmatpush2.msra.mxu0 0.0
    %380 = vmatprep.subr.mxu0 0.0
    %381 = vmatpush2.msra.mxu0 0.0
    %382 = vmatprep.subr.mxu0 0.0
    %383 = vmatpush2.msra.mxu0 0.0
    %384 = vmatprep.subr.mxu0 0.0
    %385 = vmatpush2.msra.mxu0 0.0
    %386 = vmatprep.subr.mxu0 0.0
    %387 = vmatpush2.msra.mxu0 0.0
    %388 = vmatprep.subr.mxu0 0.0
    %389 = vmatpush2.msra.mxu0 0.0
    %390 = vmatprep.subr.mxu0 0.0
    %391 = vmatpush2.msra.mxu0 0.0
    %392 = vmatprep.subr.mxu0 0.0
    %393 = vmatpush2.msra.mxu0 0.0
    %394 = vmatprep.subr.mxu0 0.0
    %395 = vmatpush2.msra.mxu0 0.0
    %396 = vmatprep.mubr.f32.mxu0 0.0
    %397 = vmatmul.mubr.f32.gmra.mxu0 %v330
    %v398 = vpop.f32.mrf.mxu0
    %v399 = vadd.f32 %v296, %v398
    %v400 = vpop.f32.mrf.mxu0
    %401 = vdwg.mxu0
    %v402 = vld [vmem:[#allocation5] sm:$0xff]
    %v403 = vld [vmem:[#allocation5 + $0x8] sm:$0xff]
    %v404 = vld [vmem:[#allocation5 + $0x10] sm:$0xff]
    %v405 = vld [vmem:[#allocation5 + $0x18] sm:$0xff]
    %v406 = vld [vmem:[#allocation5 + $0x20] sm:$0xff]
    %v407 = vld [vmem:[#allocation5 + $0x28] sm:$0xff]
    %v408 = vld [vmem:[#allocation5 + $0x30] sm:$0xff]
    %v409 = vld [vmem:[#allocation5 + $0x38] sm:$0xff]
    %v410 = vld [vmem:[%s9] sm:$0x1]
    %v411 = vmul.f32 %v410, 16.0
    %v413 = vsel %vm200, %v399, 0
    %415 = vmatprep.subr.mxu0 0.0
    %416 = vmatpush1.msra.mxu0 0.0
    %417 = vmatprep.subr.mxu0 0.0
    %418 = vmatpush1.msra.mxu0 0.0
    %419 = vmatprep.subr.mxu0 0.0
    %420 = vmatpush1.msra.mxu0 0.0
    %421 = vmatprep.subr.mxu0 0.0
    %422 = vmatpush1.msra.mxu0 0.0
    %423 = vmatprep.subr.mxu0 0.0
    %424 = vmatpush1.msra.mxu0 0.0
    %425 = vmatprep.subr.mxu0 0.0
    %426 = vmatpush1.msra.mxu0 0.0
    %427 = vmatprep.subr.mxu0 0.0
    %428 = vmatpush1.msra.mxu0 0.0
    %429 = vmatprep.subr.mxu0 0.0
    %430 = vmatpush1.msra.mxu0 0.0
    %431 = vmatprep.subr.mxu0 0.0
    %432 = vmatpush1.msra.mxu0 %v409
    %433 = vmatprep.subr.mxu0 0.0
    %434 = vmatpush1.msra.mxu0 %v408
    %435 = vmatprep.subr.mxu0 0.0
    %436 = vmatpush1.msra.mxu0 %v407
    %437 = vmatprep.subr.mxu0 0.0
    %438 = vmatpush1.msra.mxu0 %v406
    %439 = vmatprep.subr.mxu0 0.0
    %440 = vmatpush1.msra.mxu0 %v405
    %441 = vmatprep.subr.mxu0 0.0
    %442 = vmatpush1.msra.mxu0 %v404
    %443 = vmatprep.subr.mxu0 0.0
    %444 = vmatpush1.msra.mxu0 %v403
    %445 = vmatprep.subr.mxu0 0.0
    %446 = vmatpush1.msra.mxu0 %v402
    %447 = vmatprep.subr.mxu0 0.0
    %448 = vmatpush2.msra.mxu0 0.0
    %449 = vmatprep.subr.mxu0 0.0
    %450 = vmatpush2.msra.mxu0 0.0
    %451 = vmatprep.subr.mxu0 0.0
    %452 = vmatpush2.msra.mxu0 0.0
    %453 = vmatprep.subr.mxu0 0.0
    %454 = vmatpush2.msra.mxu0 0.0
    %455 = vmatprep.subr.mxu0 0.0
    %456 = vmatpush2.msra.mxu0 0.0
    %457 = vmatprep.subr.mxu0 0.0
    %458 = vmatpush2.msra.mxu0 0.0
    %459 = vmatprep.subr.mxu0 0.0
    %460 = vmatpush2.msra.mxu0 0.0
    %461 = vmatprep.subr.mxu0 0.0
    %462 = vmatpush2.msra.mxu0 0.0
    %463 = vmatprep.subr.mxu0 0.0
    %464 = vmatpush2.msra.mxu0 0.0
    %465 = vmatprep.subr.mxu0 0.0
    %466 = vmatpush2.msra.mxu0 0.0
    %467 = vmatprep.subr.mxu0 0.0
    %468 = vmatpush2.msra.mxu0 0.0
    %469 = vmatprep.subr.mxu0 0.0
    %470 = vmatpush2.msra.mxu0 0.0
    %471 = vmatprep.subr.mxu0 0.0
    %472 = vmatpush2.msra.mxu0 0.0
    %473 = vmatprep.subr.mxu0 0.0
    %474 = vmatpush2.msra.mxu0 0.0
    %475 = vmatprep.subr.mxu0 0.0
    %476 = vmatpush2.msra.mxu0 0.0
    %477 = vmatprep.subr.mxu0 0.0
    %478 = vmatpush2.msra.mxu0 0.0
    %479 = vmatprep.mubr.f32.mxu0 0.0
    %480 = vmatmul.mubr.f32.gmra.mxu0 %v413
    %v481 = vpop.f32.mrf.mxu0
    %v482 = vadd.f32 %v411, %v481
    %v483 = vpop.f32.mrf.mxu0
    %484 = vdwg.mxu0
    %485 = vmatprep.subr.mxu0 0.0
    %486 = vmatpush1.xpose.msra.mxu0 0.0
    %487 = vmatprep.subr.mxu0 0.0
    %488 = vmatpush1.xpose.msra.mxu0 0.0
    %489 = vmatprep.subr.mxu0 0.0
    %490 = vmatpush1.xpose.msra.mxu0 0.0
    %491 = vmatprep.subr.mxu0 0.0
    %492 = vmatpush1.xpose.msra.mxu0 0.0
    %493 = vmatprep.subr.mxu0 0.0
    %494 = vmatpush1.xpose.msra.mxu0 0.0
    %495 = vmatprep.subr.mxu0 0.0
    %496 = vmatpush1.xpose.msra.mxu0 0.0
    %497 = vmatprep.subr.mxu0 0.0
    %498 = vmatpush1.xpose.msra.mxu0 0.0
    %499 = vmatprep.subr.mxu0 0.0
    %500 = vmatpush1.xpose.msra.mxu0 0.0
    %501 = vmatprep.subr.mxu0 0.0
    %502 = vmatpush1.xpose.msra.mxu0 0.0
    %503 = vmatprep.subr.mxu0 0.0
    %504 = vmatpush1.xpose.msra.mxu0 0.0
    %505 = vmatprep.subr.mxu0 0.0
    %506 = vmatpush1.xpose.msra.mxu0 0.0
    %507 = vmatprep.subr.mxu0 0.0
    %508 = vmatpush1.xpose.msra.mxu0 0.0
    %509 = vmatprep.subr.mxu0 0.0
    %510 = vmatpush1.xpose.msra.mxu0 0.0
    %511 = vmatprep.subr.mxu0 0.0
    %512 = vmatpush1.xpose.msra.mxu0 0.0
    %513 = vmatprep.subr.mxu0 0.0
    %514 = vmatpush1.xpose.msra.mxu0 0.0
    %515 = vmatprep.subr.mxu0 0.0
    %516 = vmatpush1.xpose.msra.mxu0 %v271
    %517 = vmatprep.subr.mxu0 0.0
    %518 = vmatpush2.xpose.msra.mxu0 0.0
    %519 = vmatprep.subr.mxu0 0.0
    %520 = vmatpush2.xpose.msra.mxu0 0.0
    %521 = vmatprep.subr.mxu0 0.0
    %522 = vmatpush2.xpose.msra.mxu0 0.0
    %523 = vmatprep.subr.mxu0 0.0
    %524 = vmatpush2.xpose.msra.mxu0 0.0
    %525 = vmatprep.subr.mxu0 0.0
    %526 = vmatpush2.xpose.msra.mxu0 0.0
    %527 = vmatprep.subr.mxu0 0.0
    %528 = vmatpush2.xpose.msra.mxu0 0.0
    %529 = vmatprep.subr.mxu0 0.0
    %530 = vmatpush2.xpose.msra.mxu0 0.0
    %531 = vmatprep.subr.mxu0 0.0
    %532 = vmatpush2.xpose.msra.mxu0 0.0
    %533 = vmatprep.subr.mxu0 0.0
    %534 = vmatpush2.xpose.msra.mxu0 0.0
    %535 = vmatprep.subr.mxu0 0.0
    %536 = vmatpush2.xpose.msra.mxu0 0.0
    %537 = vmatprep.subr.mxu0 0.0
    %538 = vmatpush2.xpose.msra.mxu0 0.0
    %539 = vmatprep.subr.mxu0 0.0
    %540 = vmatpush2.xpose.msra.mxu0 0.0
    %541 = vmatprep.subr.mxu0 0.0
    %542 = vmatpush2.xpose.msra.mxu0 0.0
    %543 = vmatprep.subr.mxu0 0.0
    %544 = vmatpush2.xpose.msra.mxu0 0.0
    %545 = vmatprep.subr.mxu0 0.0
    %546 = vmatpush2.xpose.msra.mxu0 0.0
    %547 = vmatprep.subr.mxu0 0.0
    %548 = vmatpush2.xpose.msra.mxu0 0.0
    %549 = vmatprep.mubr.f32.mxu0 0.0
    %550 = vmatmul.mubr.f32.gmra.mxu0 %v482
    %v551 = vpop.f32.mrf.mxu0
    %v552 = vadd.f32 0.0, %v551
    %v553 = vpop.f32.mrf.mxu0
    %554 = vdwg.mxu0
    %v555 = vsub.f32 0.0, %v552
    %v556 = vmul.f32 %v555, 1.442695
    %v557 = vpow.pop %v556
    %v558 = vadd.f32 %v557, 1.0
    %v559 = vrcp.pop %v558
    %v560 = vmul.f32 1.0, %v559
    %vm561 = vcmask 57344
    %562 = vst.msk [vmem:[#allocation7] sm:$0x1] %vm561, %v560
    // Predicated region
    $region50: #{tpu_custom_call.1} parent=1 // pred_check
      _
    $region51: #{tpu_custom_call.1} parent=1 // pred_check_branch
      %564 = sbr.rel (0) target = $region53
    $region52: #{tpu_custom_call.1} parent=1 // pred_region
      %s566 = ssub.s32 16, 16
      %567 = vsyncadd [#allocation4], %s566
      %s569 = sshll.u32 [#allocation7], 4
      %s570 = int_to_ptr.vmem [resolvable:$true] %s569
      %572 = dma.vmem_to_hbm [thread:$0]  %s570, 16, %s10, [#allocation4]
    $region53: #{tpu_custom_call.1} parent=1 // pred_fallthru
      _
    // Predicated region
    $region54: #{tpu_custom_call.1} parent=1 // pred_check
      _
    $region55: #{tpu_custom_call.1} parent=1 // pred_check_branch
      %574 = sbr.rel (0) target = $region57
    $region56: #{tpu_custom_call.1} parent=1 // pred_region
      %575 = dma.done [#allocation4], 16
    $region57: #{tpu_custom_call.1} parent=1 // pred_fallthru
      _
    %576 = vsyncpa [#allocation3], 1
    %577 = vsyncpa [#allocation6], 1
    %578 = vsyncpa [#allocation4], 1

</llo_original>
